<compile_context>
chip_gen: v6e
topology: v6e:2x2x1
jax: 0.10.0
libtpu: 0.0.40
codegen_flags: <defaults>
</compile_context>

<pallas_src>
import functools

import jax
import jax.numpy as jnp
from jax.experimental import pallas as pl
from jax.experimental.pallas import tpu as pltpu


def _pow_const(base, p):
    """Trace-time specialized power for a baked-in Python-float exponent (p != 0)."""
    if p == 1.0:
        return base
    if p == 2.0:
        return base * base
    if p == 0.5:
        return jnp.sqrt(base)
    if p == 1.5:
        return base * jnp.sqrt(base)
    return jnp.exp(p * jnp.log(base))  # generic positive base


def _row_mask(tile_rows, tile_n, n_total):
    """(tile_rows, 1) bool mask of rows that lie inside the real batch (ragged tile)."""
    i = pl.program_id(0)
    row_ids = i * tile_n + jax.lax.broadcasted_iota(jnp.int32, (tile_rows, 1), 0)
    return row_ids < n_total


def _write_partial(out_ref, partial):
    """Store the tile's partial sum at [0, 0], zeros elsewhere (lane-dense block),
    so the wrapper reduction is a flat contiguous jnp.sum (no strided gather)."""
    r = jax.lax.broadcasted_iota(jnp.int32, out_ref.shape, 0)
    l = jax.lax.broadcasted_iota(jnp.int32, out_ref.shape, 1)
    out_ref[...] = jnp.where((r == 0) & (l == 0), partial, 0.0).astype(jnp.float32)


def _anchor_loss_kernel(x_ref, tgt_ref, out_ref, *,
                        gamma_pos, gamma_neg, slack, n_total, tile_n):
    """Anchor-loss tile: sigmoid, BCE-with-logits, anchor scaling, row reductions."""
    x = x_ref[...].astype(jnp.float32)          # (TN, C) logits, f32 math
    tgt = tgt_ref[...]                          # (TN, 1) int32 labels
    tn, c = x.shape

    cls_ids = jax.lax.broadcasted_iota(jnp.int32, (tn, c), 1)
    is_target = cls_ids == tgt                  # boolean one-hot mask

    pt = jax.nn.sigmoid(x)

    # BCEWithLogits WITHOUT the "- x * one_hot" term (added back per-row below):
    #   bce0 = max(x, 0) + log1p(exp(-|x|)),  log1p(exp(-|x|)) == -log(where(x>=0, pt, 1-pt))
    # Reusing pt saves one EUP op/element; costs a few ulps once sigmoid saturates
    # (|x| > ~9), which is fine at this port's 1e-5 tolerance.
    bce0 = jnp.maximum(x, 0.0) - jnp.log(jnp.where(x >= 0.0, pt, 1.0 - pt))

    # Per-row gathers of the target column (cheap (TN, 1) quantities).
    x_t = jnp.sum(jnp.where(is_target, x, 0.0), axis=1, keepdims=True)   # target logit
    pt_t = jnp.sum(jnp.where(is_target, pt, 0.0), axis=1, keepdims=True)  # target prob
    # Exact per-row BCE at the target column (stable log1p form; only TN EUP ops).
    bce_t = jnp.maximum(x_t, 0.0) - x_t + jnp.log1p(jnp.exp(-jnp.abs(x_t)))

    need_pos = gamma_pos != 0.0
    need_neg = gamma_neg != 0.0

    if need_neg:
        # Negative scaling applies to all C columns -> unavoidable full-tile pow.
        pt_pos = jnp.maximum(pt_t - slack, 0.0)
        sn = _pow_const(1.0 + pt - pt_pos, gamma_neg)          # (TN, C)
        sn_t = _pow_const(1.0 + pt_t - pt_pos, gamma_neg)      # (TN, 1) value at target
        base = jnp.sum(sn * bce0, axis=1, keepdims=True)
    else:
        sn_t = 1.0
        base = jnp.sum(bce0, axis=1, keepdims=True)

    if need_pos:
        # Positive scaling only ever multiplies the target column -> per-row only.
        pt_neg = jnp.max(jnp.where(is_target, 0.0, pt), axis=1, keepdims=True)
        pt_neg = jnp.minimum(pt_neg + slack, 1.0)
        sp_t = _pow_const(1.0 - pt_t + pt_neg, gamma_pos)      # (TN, 1)
    else:
        sp_t = 1.0

    # sum_c[one_hot*sp*bce + (1-one_hot)*sn*bce]
    #   == sum_c(sn*bce0) - sn_t*x_t + (sp_t - sn_t)*bce_t      (bce = bce0 - one_hot*x)
    per_sample = base - sn_t * x_t + (sp_t - sn_t) * bce_t     # (TN, 1)
    per_sample = jnp.where(_row_mask(tn, tile_n, n_total), per_sample, 0.0)
    _write_partial(out_ref, jnp.sum(per_sample))


def _ce_kernel(x_ref, tgt_ref, out_ref, *, n_total, tile_n):
    """Warm-up tile: standard cross-entropy partial sum (== nn.CrossEntropyLoss sum)."""
    x = x_ref[...].astype(jnp.float32)          # (TN, C)
    tgt = tgt_ref[...]                          # (TN, 1)
    tn, c = x.shape
    cls_ids = jax.lax.broadcasted_iota(jnp.int32, (tn, c), 1)
    is_target = cls_ids == tgt

    m = jnp.max(x, axis=1, keepdims=True)
    lse = m + jnp.log(jnp.sum(jnp.exp(x - m), axis=1, keepdims=True))       # (TN, 1)
    logit_t = jnp.sum(jnp.where(is_target, x, 0.0), axis=1, keepdims=True)  # (TN, 1)
    per_sample = lse - logit_t
    per_sample = jnp.where(_row_mask(tn, tile_n, n_total), per_sample, 0.0)
    _write_partial(out_ref, jnp.sum(per_sample))


_FALLBACK_VMEM_BYTES = 64 * 1024 * 1024   # conservative default == v7x physical VMEM


def _vmem_limit_bytes():
    """3/4 of physical VMEM: 48 MiB on v7x, 96 MiB on v5e/v6e (capped at 96 MiB)."""
    try:
        phys = int(pltpu.get_tpu_info().vmem_capacity_bytes)
    except Exception:
        phys = _FALLBACK_VMEM_BYTES
    return min((phys * 3) // 4, 96 * 1024 * 1024)


def _pick_tile_n(n, c, in_dtype, vmem_limit):
    """Rows per tile, sized by VMEM bytes (not a fixed row clamp).

    Budget (with ~30% headroom under vmem_limit) covers:
      * 2x double-buffered (TN, C) input block (native dtype, lanes pad to 128),
      * ~7 live (TN, C) f32 intermediates (x, pt, bce0, scaling, products, ...),
      * 2x double-buffered (TN, 1) target block (pads to 128 lanes).
    """
    itemsize = jnp.dtype(in_dtype).itemsize
    sub = 16 if itemsize == 2 else 8          # bf16 sublane packing
    c_pad = ((c + 127) // 128) * 128          # lane dim pads to 128 in VMEM
    bytes_per_row = c_pad * (2 * itemsize + 7 * 4) + 2 * 128 * 4
    tn = int(vmem_limit * 0.7) // bytes_per_row
    tn = max(sub, tn - tn % sub)

    n_pad = -(-n // sub) * sub
    tn = min(tn, n_pad)
    # Megacore (v7x has 2 TensorCores): keep >= 2 grid steps when there is enough
    # work so the 'parallel' grid axis can actually be split across cores.
    if n_pad >= 2 * sub and tn >= n_pad:
        half = ((n_pad // 2 + sub - 1) // sub) * sub
        tn = min(tn, half)
    return tn


def _run_tiled(kernel_fn, x, tgt, tile_n, vmem_limit):
    n, c = x.shape
    num_tiles = pl.cdiv(n, tile_n)
    partials = pl.pallas_call(
        kernel_fn,
        out_shape=jax.ShapeDtypeStruct((num_tiles * 8, 128), jnp.float32),
        grid=(num_tiles,),
        in_specs=[
            pl.BlockSpec((tile_n, c), lambda i: (i, 0)),
            pl.BlockSpec((tile_n, 1), lambda i: (i, 0)),
        ],
        # lane-dense (8, 128) block per tile: unmasked store, independent per grid step
        out_specs=pl.BlockSpec((8, 128), lambda i: (i, 0)),
        compiler_params=pltpu.CompilerParams(
            dimension_semantics=("parallel",),
            vmem_limit_bytes=int(vmem_limit),
        ),
    )(x, tgt)
    # Every block is zeros except its [0, 0] partial -> flat contiguous reduction.
    return jnp.sum(partials) / jnp.float32(n)


class AnchorLoss:
    """JAX/Pallas port of the PyTorch AnchorLoss module (forward only)."""

    def __init__(self, gamma=0.5, slack=0.05, anchor="neg", warm_up=True, tile_n=None):
        assert anchor in ("neg", "pos"), "Anchor type should be either ``neg`` or ``pos``"
        self.gamma = float(gamma)
        self.slack = float(slack)
        self.warm_up = warm_up
        self.anchor = anchor
        self._tile_n = tile_n           # optional perf knob / test override
        if anchor == "pos":
            self.gamma_pos, self.gamma_neg = self.gamma, 0.0
        else:
            self.gamma_pos, self.gamma_neg = 0.0, self.gamma

    def __call__(self, input, target, epoch=None):
        if self.warm_up and epoch is None:
            raise AssertionError(
                "If warm_up is set to ``True``, current epoch number is required")
        n, c = input.shape
        tgt = target.reshape(-1, 1).astype(jnp.int32)
        vmem_limit = _vmem_limit_bytes()
        tile_n = (self._tile_n if self._tile_n is not None
                  else _pick_tile_n(n, c, input.dtype, vmem_limit))
        # NOTE: epoch is a Python int (as in typical PyTorch training loops),
        # so the warm-up branch is resolved at trace time.
        if self.warm_up and epoch < 5:
            kernel = functools.partial(_ce_kernel, n_total=n, tile_n=tile_n)
        else:
            kernel = functools.partial(
                _anchor_loss_kernel,
                gamma_pos=self.gamma_pos, gamma_neg=self.gamma_neg,
                slack=self.slack, n_total=n, tile_n=tile_n)
        return _run_tiled(kernel, input, tgt, tile_n, vmem_limit)


# --------------------------- pure-JAX references ----------------------------

def _reference_anchor_loss(x, target, gamma_pos, gamma_neg, slack):
    """Mirrors the PyTorch forward (epoch >= 5 path)."""
    x = x.astype(jnp.float32)
    n, c = x.shape
    class_mask = jax.nn.one_hot(target, c, dtype=jnp.float32)
    pt = jax.nn.sigmoid(x)
    bce = jnp.maximum(x, 0.0) - x * class_mask + jnp.log1p(jnp.exp(-jnp.abs(x)))
    pt_pos = jnp.sum(pt * class_mask, axis=1, keepdims=True)
    pt_neg = jnp.max(pt * (1.0 - class_mask), axis=1, keepdims=True)
    pt_neg = jnp.minimum(pt_neg + slack, 1.0)
    pt_pos = jnp.maximum(pt_pos - slack, 0.0)
    scaling_pos = jnp.power(1.0 - pt + pt_neg, gamma_pos)
    scaling_neg = jnp.power(1.0 + pt - pt_pos, gamma_neg)
    loss = class_mask * scaling_pos * bce + (1.0 - class_mask) * scaling_neg * bce
    return jnp.mean(jnp.sum(loss, axis=1))


def _reference_ce(x, target):
    x = x.astype(jnp.float32)
    lse = jax.nn.logsumexp(x, axis=1)
    logit_t = jnp.take_along_axis(x, target[:, None], axis=1)[:, 0]
    return jnp.mean(lse - logit_t)


if __name__ == "__main__":
    key = jax.random.PRNGKey(0)
    kx, kt = jax.random.split(key)

    # Test A: small (N, C) logits / (N,) labels, warm-up CE + anchor='neg' path.
    N, C = 8, 16
    logits = jax.random.normal(kx, (N, C), dtype=jnp.float32)
    target = jax.random.randint(kt, (N,), 0, C, dtype=jnp.int32)

    loss_fn = AnchorLoss(gamma=0.5, slack=0.05, anchor="neg", warm_up=True)
    warm = loss_fn(logits, target, epoch=0)     # warm-up (epoch < 5): cross entropy
    loss = loss_fn(logits, target, epoch=10)    # main anchor-loss path
    jax.block_until_ready((warm, loss))

    assert jnp.allclose(warm, _reference_ce(logits, target), atol=1e-5, rtol=1e-5), warm
    assert jnp.allclose(
        loss, _reference_anchor_loss(logits, target, 0.0, 0.5, 0.05),
        atol=1e-5, rtol=1e-5), loss

    # Test B: multi-tile with a ragged last tile (N % tile_n != 0) and anchor='pos'
    # (exercises the per-row positive-scaling path), explicit tile override.
    kx2, kt2 = jax.random.split(jax.random.PRNGKey(1))
    N2, C2 = 20, 16
    logits2 = jax.random.normal(kx2, (N2, C2), dtype=jnp.float32)
    target2 = jax.random.randint(kt2, (N2,), 0, C2, dtype=jnp.int32)

    loss_fn2 = AnchorLoss(gamma=2.0, slack=0.05, anchor="pos", warm_up=False, tile_n=8)
    loss2 = loss_fn2(logits2, target2)
    jax.block_until_ready(loss2)
    assert jnp.allclose(
        loss2, _reference_anchor_loss(logits2, target2, 2.0, 0.0, 0.05),
        atol=1e-5, rtol=1e-5), loss2

    # Test C: bf16 logits (kept bf16 at the pallas_call boundary), auto tiling
    # (exercises the >=2-grid-steps megacore split and bf16 sublane rounding).
    kx3, kt3 = jax.random.split(jax.random.PRNGKey(2))
    N3, C3 = 24, 16
    logits3 = jax.random.normal(kx3, (N3, C3), dtype=jnp.float32).astype(jnp.bfloat16)
    target3 = jax.random.randint(kt3, (N3,), 0, C3, dtype=jnp.int32)

    loss_fn3 = AnchorLoss(gamma=1.5, slack=0.05, anchor="neg", warm_up=False)
    loss3 = loss_fn3(logits3, target3)
    jax.block_until_ready(loss3)
    assert jnp.allclose(
        loss3, _reference_anchor_loss(logits3, target3, 0.0, 1.5, 0.05),
        atol=1e-4, rtol=1e-4), loss3

    print("KERNEL_OK")
</pallas_src>

<mosaic_0001>
module attributes {stable_mosaic.version = 11 : i64} {
  func.func @_ce_kernel(%arg0: i32, %arg1: memref<8x16xf32, #tpu.memory_space<vmem>>, %arg2: memref<8x1xi32, #tpu.memory_space<vmem>>, %arg3: memref<8x128xf32, #tpu.memory_space<vmem>>) attributes {dimension_semantics = [#tpu.dimension_semantics<parallel>], iteration_bounds = array<i64: 1>, scalar_prefetch = 0 : i64, scratch_operands = 0 : i64, tpu.core_type = #tpu.core_type<tc>, window_params = [{transform_indices = @transform_0, window_bounds = array<i64: 8, 16>}, {transform_indices = @transform_1, window_bounds = array<i64: 8, 1>}, {transform_indices = @transform_2, window_bounds = array<i64: 8, 128>}]} {
    %c0 = arith.constant 0 : index
    %c0_0 = arith.constant 0 : index
    %0 = vector.load %arg1[%c0, %c0_0] : memref<8x16xf32, #tpu.memory_space<vmem>>, vector<8x16xf32>
    %c0_1 = arith.constant 0 : index
    %c0_2 = arith.constant 0 : index
    %1 = vector.load %arg2[%c0_1, %c0_2] : memref<8x1xi32, #tpu.memory_space<vmem>>, vector<8x1xi32>
    %2 = tpu.iota {dimensions = array<i32: 1>} : vector<8x16xi32>
    %3 = vector.broadcast %1 : vector<8x1xi32> to vector<8x16xi32>
    %4 = arith.cmpi eq, %2, %3 : vector<8x16xi32>
    %cst = arith.constant dense<0xFF800000> : vector<8xf32>
    %5 = vector.multi_reduction <maximumf>, %0, %cst [1] : vector<8x16xf32> to vector<8xf32>
    %6 = vector.shape_cast %5 : vector<8xf32> to vector<8x1xf32>
    %7 = vector.broadcast %6 : vector<8x1xf32> to vector<8x16xf32>
    %8 = arith.subf %0, %7 : vector<8x16xf32>
    %9 = math.exp %8 : vector<8x16xf32>
    %cst_3 = arith.constant dense<0.000000e+00> : vector<8xf32>
    %10 = vector.multi_reduction <add>, %9, %cst_3 [1] : vector<8x16xf32> to vector<8xf32>
    %11 = vector.shape_cast %10 : vector<8xf32> to vector<8x1xf32>
    %12 = math.log %11 : vector<8x1xf32>
    %13 = arith.addf %6, %12 : vector<8x1xf32>
    %cst_4 = arith.constant 0.000000e+00 : f32
    %14 = vector.broadcast %cst_4 : f32 to vector<8x16xf32>
    %15 = arith.select %4, %0, %14 : vector<8x16xi1>, vector<8x16xf32>
    %cst_5 = arith.constant dense<0.000000e+00> : vector<8xf32>
    %16 = vector.multi_reduction <add>, %15, %cst_5 [1] : vector<8x16xf32> to vector<8xf32>
    %17 = vector.shape_cast %16 : vector<8xf32> to vector<8x1xf32>
    %18 = arith.subf %13, %17 : vector<8x1xf32>
    %c8_i32 = arith.constant 8 : i32
    %19 = arith.muli %arg0, %c8_i32 : i32
    %20 = tpu.iota {dimensions = array<i32: 0>} : vector<8x1xi32>
    %21 = vector.broadcast %19 : i32 to vector<8x1xi32>
    %22 = arith.addi %21, %20 : vector<8x1xi32>
    %c8_i32_6 = arith.constant 8 : i32
    %23 = vector.broadcast %c8_i32_6 : i32 to vector<8x1xi32>
    %24 = arith.cmpi slt, %22, %23 : vector<8x1xi32>
    %cst_7 = arith.constant 0.000000e+00 : f32
    %25 = vector.broadcast %cst_7 : f32 to vector<8x1xf32>
    %26 = arith.select %24, %18, %25 : vector<8x1xi1>, vector<8x1xf32>
    %27 = vector.shape_cast %26 : vector<8x1xf32> to vector<1x8x1xf32>
    %cst_8 = arith.constant dense<0.000000e+00> : vector<1xf32>
    %28 = vector.multi_reduction <add>, %27, %cst_8 [1, 2] : vector<1x8x1xf32> to vector<1xf32>
    %29 = vector.shape_cast %28 : vector<1xf32> to vector<1x1x1xf32>
    %30 = vector.extract %29[0, 0, 0] : f32 from vector<1x1x1xf32>
    %31 = tpu.iota {dimensions = array<i32: 0>} : vector<8x128xi32>
    %32 = tpu.iota {dimensions = array<i32: 1>} : vector<8x128xi32>
    %c0_i32 = arith.constant 0 : i32
    %33 = vector.broadcast %c0_i32 : i32 to vector<8x128xi32>
    %34 = arith.cmpi eq, %31, %33 : vector<8x128xi32>
    %c0_i32_9 = arith.constant 0 : i32
    %35 = vector.broadcast %c0_i32_9 : i32 to vector<8x128xi32>
    %36 = arith.cmpi eq, %32, %35 : vector<8x128xi32>
    %37 = arith.andi %34, %36 : vector<8x128xi1>
    %cst_10 = arith.constant 0.000000e+00 : f32
    %38 = vector.broadcast %30 : f32 to vector<8x128xf32>
    %39 = vector.broadcast %cst_10 : f32 to vector<8x128xf32>
    %40 = arith.select %37, %38, %39 : vector<8x128xi1>, vector<8x128xf32>
    %c0_11 = arith.constant 0 : index
    %c0_12 = arith.constant 0 : index
    %41 = vector.load %arg3[%c0_11, %c0_12] : memref<8x128xf32, #tpu.memory_space<vmem>>, vector<8x128xf32>
    tpu.vector_store %arg3[%c0_11, %c0_12], %40 {strides = array<i32>} : memref<8x128xf32, #tpu.memory_space<vmem>>, vector<8x128xf32>,
    return
  }
  func.func @transform_0(%arg0: i32) -> (i32, i32) {
    %c0_i32 = arith.constant 0 : i32
    %c0_i32_0 = arith.constant 0 : i32
    return %arg0, %c0_i32 : i32, i32
  }
  func.func @transform_1(%arg0: i32) -> (i32, i32) {
    %c0_i32 = arith.constant 0 : i32
    %c0_i32_0 = arith.constant 0 : i32
    return %arg0, %c0_i32 : i32, i32
  }
  func.func @transform_2(%arg0: i32) -> (i32, i32) {
    %c0_i32 = arith.constant 0 : i32
    %c0_i32_0 = arith.constant 0 : i32
    return %arg0, %c0_i32 : i32, i32
  }
}

</mosaic_0001>

<llo_original>
// kernel: tpu_custom_call.1
$region0: #{tpu_custom_call.1}
  #allocation0 [shape = 'u32[]', space=smem, size = 0x4, offset = 0x4, fixed_abs, tag = 'smem constant byte address 0x4 - core index']
  #allocation1 [shape = 'u32[144,128]{1,0:T(1,128)}', space=vmem, size = 0x12000, scoped, tag = 'internal scratch']
  %s0 = inlined_call_operand.vmem [shape: f32[8,16], index: 0, kind: input, shape index: {}]
  %s1 = inlined_call_operand.vmem [shape: s32[8,1], index: 1, kind: input, shape index: {}]
  %s2 = inlined_call_operand.hbm [shape: f32[8,128], index: 2, kind: output, shape index: {}]
  %s3 = sld [smem:[#allocation0]]
  $region18: #{tpu_custom_call.1} parent=0
    _
  %s5 = ssub.s32 1, %s3
  %s6 = scalar_select 0, %s5, %s3
  $region1: #{tpu_custom_call.1} parent=0
    #allocation2 [shape = 'u8[4096]{0}', space=vmem, size = 0x1000, scoped, tag = 'output window, operand 0, single buffered']
    #allocation3 [shape = 's32[1]{0}', space=sflag, size = 0x4, scoped, tag = 'scoped memory for tpu_custom_call.1']
    %7 = vsyncpa [#allocation3], 0
    // Predicated region
    $region2: #{tpu_custom_call.1} parent=1 // pred_check
      _
    $region3: #{tpu_custom_call.1} parent=1 // pred_check_branch
      %9 = sbr.rel (0) target = $region5
    $region4: #{tpu_custom_call.1} parent=1 // pred_region
      _
    $region5: #{tpu_custom_call.1} parent=1 // pred_fallthru
      _
    // Predicated region
    $region6: #{tpu_custom_call.1} parent=1 // pred_check
      _
    $region7: #{tpu_custom_call.1} parent=1 // pred_check_branch
      %11 = sbr.rel (0) target = $region9
    $region8: #{tpu_custom_call.1} parent=1 // pred_region
      _
    $region9: #{tpu_custom_call.1} parent=1 // pred_fallthru
      _
    %v12 = vld [vmem:[%s0] sm:$0xff]
    %v13 = vld [vmem:[%s1] sm:$0xff]
    %v14 = vlaneseq
    %v15 = vand.u32 %v14, 127
    %16 = vset.pattern.permute.xlu0 0
    %17 = vperm.xlu0 %16, %v13
    %v18 = vpop.permute.xlu0 %17
    %vm19 = vcmp.eq.s32.totalorder %v15, %v18
    %vm20 = vcmask 130048
    %v21 = vsel %vm20, %v12, -inf
    %22 = vmax.xlane.f32.xlu0 %v21
    %v23 = vpop.xlane.xlu0 %22
    %v24 = vsub.f32 %v12, %v23
    %v25 = vmul.f32 %v24, 1.442695
    %v26 = vpow.pop %v25
    %v27 = vsel %vm20, %v26, 0.0
    %28 = vadd.xlane.f32.xlu0 %v27
    %v29 = vpop.xlane.xlu0 %28
    %v30 = vlog2.pop %v29
    %v31 = vmul.f32 %v30, 0.6931472
    %v32 = vadd.f32 %v23, %v31
    %v33 = vsel %vm19, %v12, 0.0
    %v34 = vsel %vm20, %v33, 0.0
    %35 = vadd.xlane.f32.xlu0 %v34
    %v36 = vpop.xlane.xlu0 %35
    %v37 = vsub.f32 %v32, %v36
    %s38 = smul.u32 0, 8
    %v39 = vlaneseq
    %v40 = vshrl.u32 %v39, 7
    %v41 = vstv %s38
    %v42 = vadd.s32 %v41, %v40
    %vm43 = vcmp.lt.s32.totalorder %v42, 8
    %v44 = vsel %vm43, %v37, 0.0
    %vm45 = vcmask 7168
    %v46 = vsel %vm45, %v44, 0.0
    %47 = vadd.xlane.f32.xlu0 %v46
    %v48 = vpop.xlane.xlu0 %47
    %v49 = vrot.slane %v48, 4
    %v50 = vadd.f32 %v48, %v49
    %v51 = vrot.slane %v50, 2
    %v52 = vadd.f32 %v50, %v51
    %v53 = vrot.slane %v52, 1
    %v54 = vadd.f32 %v52, %v53
    %s55 = vtos %v54
    %vm56 = vcmp.eq.s32.totalorder %v40, 0
    %vm57 = vcmp.eq.s32.totalorder %v15, 0
    %vm58 = vmand %vm56, %vm57
    %v59 = vstv %s55
    %v60 = vsel %vm58, %v59, 0.0
    %61 = vst [vmem:[#allocation2] sm:$0xff] %v60
    // Predicated region
    $region10: #{tpu_custom_call.1} parent=1 // pred_check
      _
    $region11: #{tpu_custom_call.1} parent=1 // pred_check_branch
      %63 = sbr.rel (0) target = $region13
    $region12: #{tpu_custom_call.1} parent=1 // pred_region
      %s65 = ssub.s32 128, 128
      %66 = vsyncadd [#allocation3], %s65
      %s68 = sshll.u32 [#allocation2], 4
      %s69 = int_to_ptr.vmem [resolvable:$true] %s68
      %71 = dma.vmem_to_hbm [thread:$0]  %s69, 128, %s2, [#allocation3]
    $region13: #{tpu_custom_call.1} parent=1 // pred_fallthru
      _
    // Predicated region
    $region14: #{tpu_custom_call.1} parent=1 // pred_check
      _
    $region15: #{tpu_custom_call.1} parent=1 // pred_check_branch
      %73 = sbr.rel (0) target = $region17
    $region16: #{tpu_custom_call.1} parent=1 // pred_region
      %74 = dma.done [#allocation3], 128
    $region17: #{tpu_custom_call.1} parent=1 // pred_fallthru
      _
    %75 = vsyncpa [#allocation3], 1

</llo_original>
